<compile_context>
chip_gen: v5e
topology: v5e:2x2
jax: 0.10.0
libtpu: 0.0.40
codegen_flags: <defaults>
</compile_context>

<pallas_src>
import jax
import jax.numpy as jnp
from jax import lax
from jax.experimental import pallas as pl
from jax.experimental.pallas import tpu as pltpu

EPS = 1e-12  # matches torch.nn.functional.normalize default eps

_K_TILE_THRESHOLD = 2048          # keep full F_in resident below this
_VMEM_LIMIT_BYTES = 48 * 1024 * 1024  # within v7x's 64 MiB physical, with headroom


def _round_up(v, m):
    return ((v + m - 1) // m) * m


def _largest_divisor(total, upper, granule):
    """Largest multiple of `granule` that divides `total` and is <= max(upper, granule).

    `total` must itself be a multiple of `granule` (guaranteed by padding)."""
    cand = max(granule, (upper // granule) * granule)
    while total % cand != 0:
        cand -= granule
    return cand


def _normed_linear_kernel(x_ref, w_ref, xinv_ref, winv_ref, o_ref, acc_ref):
    # x_ref: (tm, tk) input dtype, w_ref: (tk, tn) input dtype,
    # xinv_ref: (tm, 1) f32, winv_ref: (1, tn) f32,
    # o_ref: (tm, tn) out dtype, acc_ref: (tm, tn) f32 scratch.
    k = pl.program_id(2)  # K (F_in) axis is always the innermost grid axis

    @pl.when(k == 0)
    def _init():
        acc_ref[...] = jnp.zeros_like(acc_ref)

    # Raw-dtype operands on the MXU with f32 accumulation.
    acc_ref[...] += jnp.dot(
        x_ref[...], w_ref[...], preferred_element_type=jnp.float32
    )

    @pl.when(k == pl.num_programs(2) - 1)
    def _finalize():
        # Rank-1 scaling commutes with the matmul: equivalent to normalizing the
        # operands, but O(tm*tn) instead of O(tm*tk + tk*tn) per step.
        o_ref[...] = (
            acc_ref[...] * xinv_ref[...] * winv_ref[...]
        ).astype(o_ref.dtype)


def normed_linear(x, weight, *, tm=256, tn=256, tk=512):
    """out = normalize(x, dim=1) @ normalize(weight, dim=0)."""
    n, f_in = x.shape
    f_in_w, f_out = weight.shape
    assert f_in == f_in_w
    out_dtype = x.dtype

    # --- Padding: hardware granules only (rows -> sublane, F_out -> lane=128). ---
    row_align = 8 if x.dtype == jnp.float32 else 16
    n_pad = _round_up(n, row_align)
    f_out_pad = _round_up(f_out, 128)

    if f_in > _K_TILE_THRESHOLD:
        # K-tiled path: pad F_in to the lane granule and pick a K tile dividing it.
        f_in_pad = _round_up(f_in, 128)
        tk_eff = _largest_divisor(f_in_pad, min(tk, f_in_pad), 128)
    else:
        f_in_pad = f_in   # full-dim blocks are allowed regardless of 128-alignment
        tk_eff = f_in

    # --- Tile sizes: divisors of the padded dims (no partial blocks, no tile-pad). ---
    tm_eff = _largest_divisor(n_pad, min(tm, n_pad), row_align)
    tn_eff = _largest_divisor(f_out_pad, min(tn, f_out_pad), 128)
    num_i = n_pad // tm_eff
    num_j = f_out_pad // tn_eff
    num_k = f_in_pad // tk_eff

    # v7x has 2 TensorCores: keep >= 2 blocks along a "parallel" axis when the
    # row dimension allows it (neutral on single-TC v5e/v6e).
    if num_i * num_j == 1 and n_pad >= 2 * row_align:
        tm_eff = _largest_divisor(n_pad, n_pad // 2, row_align)
        num_i = n_pad // tm_eff

    # --- Pad inputs (granule-only; zero padding is mathematically inert). ---
    x_p = x
    if (n_pad, f_in_pad) != (n, f_in):
        x_p = jnp.pad(x, ((0, n_pad - n), (0, f_in_pad - f_in)))
    w_p = weight
    if (f_in_pad, f_out_pad) != (f_in, f_out):
        w_p = jnp.pad(weight, ((0, f_in_pad - f_in), (0, f_out_pad - f_out)))

    # --- Hoisted reciprocal norms (computed once, f32, finite on padded rows/cols).
    # rsqrt(max(sum(v^2), eps^2)) == 1 / max(||v||, eps)  (torch F.normalize).
    x32 = x_p.astype(jnp.float32)
    x_inv = lax.rsqrt(
        jnp.maximum(jnp.sum(x32 * x32, axis=1, keepdims=True), EPS * EPS)
    )  # (n_pad, 1)
    w32 = w_p.astype(jnp.float32)
    w_inv = lax.rsqrt(
        jnp.maximum(jnp.sum(w32 * w32, axis=0, keepdims=True), EPS * EPS)
    )  # (1, f_out_pad)

    # --- Grid ordering: keep the larger operand HBM-resident (fetched once when
    # F_in is untiled); the smaller operand is re-streamed. K axis is innermost. ---
    weight_is_larger = (f_in_pad * f_out_pad) >= (n_pad * f_in_pad)
    if weight_is_larger:
        grid = (num_j, num_i, num_k)
        x_map = lambda j, i, k: (i, k)
        w_map = lambda j, i, k: (k, j)
        xinv_map = lambda j, i, k: (i, 0)
        winv_map = lambda j, i, k: (0, j)
        out_map = lambda j, i, k: (i, j)
    else:
        grid = (num_i, num_j, num_k)
        x_map = lambda i, j, k: (i, k)
        w_map = lambda i, j, k: (k, j)
        xinv_map = lambda i, j, k: (i, 0)
        winv_map = lambda i, j, k: (0, j)
        out_map = lambda i, j, k: (i, j)

    cost = pl.CostEstimate(
        flops=2 * n_pad * f_in_pad * f_out_pad,
        transcendentals=0,
        bytes_accessed=(
            x_p.size * x_p.dtype.itemsize
            + w_p.size * w_p.dtype.itemsize
            + n_pad * f_out_pad * jnp.dtype(out_dtype).itemsize
        ),
    )

    out = pl.pallas_call(
        _normed_linear_kernel,
        out_shape=jax.ShapeDtypeStruct((n_pad, f_out_pad), out_dtype),
        grid_spec=pltpu.PrefetchScalarGridSpec(
            num_scalar_prefetch=0,
            grid=grid,
            in_specs=[
                pl.BlockSpec((tm_eff, tk_eff), x_map),
                pl.BlockSpec((tk_eff, tn_eff), w_map),
                pl.BlockSpec((tm_eff, 1), xinv_map),
                pl.BlockSpec((1, tn_eff), winv_map),
            ],
            out_specs=pl.BlockSpec((tm_eff, tn_eff), out_map),
            scratch_shapes=[pltpu.VMEM((tm_eff, tn_eff), jnp.float32)],
        ),
        compiler_params=pltpu.CompilerParams(
            dimension_semantics=("parallel", "parallel", "arbitrary"),
            vmem_limit_bytes=_VMEM_LIMIT_BYTES,
        ),
        cost_estimate=cost,
    )(x_p, w_p, x_inv, w_inv)

    return out[:n, :f_out]


def init_normed_linear_weight(key, in_features, out_features):
    """Deterministic replica of the PyTorch __init__:
       uniform_(-1, 1).renorm_(2, 1, 1e-05).mul_(100000.0)
    renorm_(p=2, dim=1, maxnorm=1e-5): each column is scaled so its L2 norm is
    at most 1e-5, then the whole tensor is multiplied by 1e5.
    """
    w = jax.random.uniform(
        key, (in_features, out_features), dtype=jnp.float32, minval=-1.0, maxval=1.0
    )
    col_norm = jnp.sqrt(jnp.sum(w * w, axis=0, keepdims=True))  # (1, F_out)
    scale = jnp.where(col_norm > 1e-5, 1e-5 / (col_norm + 1e-7), 1.0)
    return w * scale * 1e5


def normed_linear_ref(x, weight):
    x_n = x / jnp.maximum(jnp.linalg.norm(x, axis=1, keepdims=True), EPS)
    w_n = weight / jnp.maximum(jnp.linalg.norm(weight, axis=0, keepdims=True), EPS)
    return x_n @ w_n


if __name__ == "__main__":
    key = jax.random.PRNGKey(0)
    k_x, k_w, k_x2, k_w2 = jax.random.split(key, 4)

    # Small demo shapes consistent with the module (batch=8, in=32, out=16).
    N, IN_FEATURES, OUT_FEATURES = 8, 32, 16
    x = jax.random.normal(k_x, (N, IN_FEATURES), dtype=jnp.float32)
    weight = init_normed_linear_weight(k_w, IN_FEATURES, OUT_FEATURES)

    out = jax.block_until_ready(normed_linear(x, weight))
    ref = normed_linear_ref(x, weight)
    assert out.shape == (N, OUT_FEATURES)
    assert jnp.allclose(out, ref, atol=2e-5, rtol=2e-5), float(
        jnp.max(jnp.abs(out - ref))
    )

    # Larger ragged case: exercises 128-granule padding (272 -> 384, not 512),
    # a multi-tile grid, and the weight-resident grid ordering.
    N2, IN2, OUT2 = 40, 64, 272
    x2 = jax.random.normal(k_x2, (N2, IN2), dtype=jnp.float32)
    w2 = init_normed_linear_weight(k_w2, IN2, OUT2)

    out2 = jax.block_until_ready(normed_linear(x2, w2))
    ref2 = normed_linear_ref(x2, w2)
    assert out2.shape == (N2, OUT2)
    assert jnp.allclose(out2, ref2, atol=2e-5, rtol=2e-5), float(
        jnp.max(jnp.abs(out2 - ref2))
    )

    print("KERNEL_OK")
</pallas_src>

<mosaic_0001>
module attributes {stable_mosaic.version = 11 : i64} {
  func.func @_normed_linear_kernel(%arg0: i32, %arg1: i32, %arg2: i32, %arg3: memref<8x32xf32, #tpu.memory_space<vmem>>, %arg4: memref<32x128xf32, #tpu.memory_space<vmem>>, %arg5: memref<8x1xf32, #tpu.memory_space<vmem>>, %arg6: memref<1x128xf32, #tpu.memory_space<vmem>>, %arg7: memref<8x128xf32, #tpu.memory_space<vmem>>, %arg8: memref<8x128xf32, #tpu.memory_space<vmem>>) attributes {dimension_semantics = [#tpu.dimension_semantics<parallel>, #tpu.dimension_semantics<parallel>, #tpu.dimension_semantics<arbitrary>], iteration_bounds = array<i64: 1, 1, 1>, scalar_prefetch = 0 : i64, scratch_operands = 1 : i64, tpu.core_type = #tpu.core_type<tc>, window_params = [{transform_indices = @transform_0, window_bounds = array<i64: 8, 32>}, {transform_indices = @transform_1, window_bounds = array<i64: 32, 128>}, {transform_indices = @transform_2, window_bounds = array<i64: 8, 1>}, {transform_indices = @transform_3, window_bounds = array<i64: 1, 128>}, {transform_indices = @transform_4, window_bounds = array<i64: 8, 128>}]} {
    %c0_i32 = arith.constant 0 : i32
    %0 = arith.cmpi eq, %arg2, %c0_i32 : i32
    %1 = arith.extui %0 : i1 to i32
    %c0_i32_0 = arith.constant 0 : i32
    %2 = arith.cmpi ne, %1, %c0_i32_0 : i32
    scf.if %2 {
      %cst_10 = arith.constant 0.000000e+00 : f32
      %12 = vector.broadcast %cst_10 : f32 to vector<8x128xf32>
      %c0_11 = arith.constant 0 : index
      %c0_12 = arith.constant 0 : index
      %13 = vector.load %arg8[%c0_11, %c0_12] : memref<8x128xf32, #tpu.memory_space<vmem>>, vector<8x128xf32>
      tpu.vector_store %arg8[%c0_11, %c0_12], %12 {strides = array<i32>} : memref<8x128xf32, #tpu.memory_space<vmem>>, vector<8x128xf32>,
    } else {
    }
    %c0 = arith.constant 0 : index
    %c0_1 = arith.constant 0 : index
    %3 = vector.load %arg8[%c0, %c0_1] : memref<8x128xf32, #tpu.memory_space<vmem>>, vector<8x128xf32>
    %c0_2 = arith.constant 0 : index
    %c0_3 = arith.constant 0 : index
    %4 = vector.load %arg3[%c0_2, %c0_3] : memref<8x32xf32, #tpu.memory_space<vmem>>, vector<8x32xf32>
    %c0_4 = arith.constant 0 : index
    %c0_5 = arith.constant 0 : index
    %5 = vector.load %arg4[%c0_4, %c0_5] : memref<32x128xf32, #tpu.memory_space<vmem>>, vector<32x128xf32>
    %cst = arith.constant dense<0.000000e+00> : vector<8x128xf32>
    %6 = tpu.matmul %4, %5, %cst {dimension_numbers = #tpu.dot_dimension_numbers<[1], [0], [0], [1], [0, 0, 1, 1], [], []>} : vector<8x32xf32>, vector<32x128xf32>, vector<8x128xf32> -> vector<8x128xf32>
    %7 = arith.addf %3, %6 : vector<8x128xf32>
    %c0_6 = arith.constant 0 : index
    %c0_7 = arith.constant 0 : index
    %8 = vector.load %arg8[%c0_6, %c0_7] : memref<8x128xf32, #tpu.memory_space<vmem>>, vector<8x128xf32>
    tpu.vector_store %arg8[%c0_6, %c0_7], %7 {strides = array<i32>} : memref<8x128xf32, #tpu.memory_space<vmem>>, vector<8x128xf32>,
    %c0_i32_8 = arith.constant 0 : i32
    %9 = arith.cmpi eq, %arg2, %c0_i32_8 : i32
    %10 = arith.extui %9 : i1 to i32
    %c0_i32_9 = arith.constant 0 : i32
    %11 = arith.cmpi ne, %10, %c0_i32_9 : i32
    scf.if %11 {
      %c0_10 = arith.constant 0 : index
      %c0_11 = arith.constant 0 : index
      %12 = vector.load %arg8[%c0_10, %c0_11] : memref<8x128xf32, #tpu.memory_space<vmem>>, vector<8x128xf32>
      %c0_12 = arith.constant 0 : index
      %c0_13 = arith.constant 0 : index
      %13 = vector.load %arg5[%c0_12, %c0_13] : memref<8x1xf32, #tpu.memory_space<vmem>>, vector<8x1xf32>
      %14 = vector.broadcast %13 : vector<8x1xf32> to vector<8x128xf32>
      %15 = arith.mulf %12, %14 : vector<8x128xf32>
      %c0_14 = arith.constant 0 : index
      %c0_15 = arith.constant 0 : index
      %16 = vector.load %arg6[%c0_14, %c0_15] : memref<1x128xf32, #tpu.memory_space<vmem>>, vector<1x128xf32>
      %17 = vector.broadcast %16 : vector<1x128xf32> to vector<8x128xf32>
      %18 = arith.mulf %15, %17 : vector<8x128xf32>
      %c0_16 = arith.constant 0 : index
      %c0_17 = arith.constant 0 : index
      %19 = vector.load %arg7[%c0_16, %c0_17] : memref<8x128xf32, #tpu.memory_space<vmem>>, vector<8x128xf32>
      tpu.vector_store %arg7[%c0_16, %c0_17], %18 {strides = array<i32>} : memref<8x128xf32, #tpu.memory_space<vmem>>, vector<8x128xf32>,
    } else {
    }
    return
  }
  func.func @transform_0(%arg0: i32, %arg1: i32, %arg2: i32) -> (i32, i32) {
    %c0_i32 = arith.constant 0 : i32
    return %arg1, %arg2 : i32, i32
  }
  func.func @transform_1(%arg0: i32, %arg1: i32, %arg2: i32) -> (i32, i32) {
    %c0_i32 = arith.constant 0 : i32
    return %arg2, %arg0 : i32, i32
  }
  func.func @transform_2(%arg0: i32, %arg1: i32, %arg2: i32) -> (i32, i32) {
    %c0_i32 = arith.constant 0 : i32
    %c0_i32_0 = arith.constant 0 : i32
    return %arg1, %c0_i32 : i32, i32
  }
  func.func @transform_3(%arg0: i32, %arg1: i32, %arg2: i32) -> (i32, i32) {
    %c0_i32 = arith.constant 0 : i32
    %c0_i32_0 = arith.constant 0 : i32
    return %c0_i32, %arg0 : i32, i32
  }
  func.func @transform_4(%arg0: i32, %arg1: i32, %arg2: i32) -> (i32, i32) {
    %c0_i32 = arith.constant 0 : i32
    return %arg1, %arg0 : i32, i32
  }
}

</mosaic_0001>

<llo_original>
// kernel: tpu_custom_call.1
$region0: #{tpu_custom_call.1}
  #allocation0 [shape = 'u32[]', space=smem, size = 0x4, offset = 0x4, fixed_abs, tag = 'smem constant byte address 0x4 - core index']
  #allocation1 [shape = 'u32[72,128]{1,0:T(1,128)}', space=vmem, size = 0x9000, scoped, tag = 'internal scratch']
  #allocation2 [shape = 'f32[8,128]{1,0:T(8,128)}', space=vmem, size = 0x1000, scoped, tag = 'scratch operand']
  %s0 = inlined_call_operand.vmem [shape: f32[8,32], index: 0, kind: input, shape index: {}]
  %s1 = inlined_call_operand.hbm [shape: f32[32,128], index: 1, kind: input, shape index: {}]
  %s2 = inlined_call_operand.vmem [shape: f32[8,1], index: 2, kind: input, shape index: {}]
  %s3 = inlined_call_operand.vmem [shape: f32[1,128], index: 3, kind: input, shape index: {}]
  %s4 = inlined_call_operand.hbm [shape: f32[8,128], index: 4, kind: output, shape index: {}]
  %s5 = sld [smem:[#allocation0]]
  $region38: #{tpu_custom_call.1} parent=0
    _
  %s7 = ssub.s32 1, %s5
  %s8 = scalar_select 0, %s7, %s5
  $region1: #{tpu_custom_call.1} parent=0
    #allocation3 [shape = 'u8[16384]{0}', space=vmem, size = 0x4000, scoped, tag = 'input window, operand 1, single buffered']
    #allocation4 [shape = 's32[1]{0}', space=sflag, size = 0x4, scoped, tag = 'scoped memory for tpu_custom_call.1']
    #allocation5 [shape = 's32[1]{0}', space=sflag, size = 0x4, scoped, tag = 'scoped memory for tpu_custom_call.1']
    #allocation6 [shape = 'u8[4096]{0}', space=vmem, size = 0x1000, scoped, tag = 'output window, operand 0, single buffered']
    %9 = vsyncpa [#allocation4], 0
    %10 = vsyncpa [#allocation5], 0
    // Predicated region
    $region2: #{tpu_custom_call.1} parent=1 // pred_check
      _
    $region3: #{tpu_custom_call.1} parent=1 // pred_check_branch
      %12 = sbr.rel (0) target = $region5
    $region4: #{tpu_custom_call.1} parent=1 // pred_region
      _
    $region5: #{tpu_custom_call.1} parent=1 // pred_fallthru
      _
    // Predicated region
    $region6: #{tpu_custom_call.1} parent=1 // pred_check
      _
    $region7: #{tpu_custom_call.1} parent=1 // pred_check_branch
      %14 = sbr.rel (0) target = $region9
    $region8: #{tpu_custom_call.1} parent=1 // pred_region
      %16 = vsyncadd [#allocation4], 0
      %s17 = sshll.u32 %s1, 4
      %s18 = int_to_ptr.hbm [resolvable:$true] %s17
      %s19 = sshll.u32 [#allocation3], 4
      %s20 = int_to_ptr.vmem [resolvable:$true] %s19
      %25 = dma.hbm_to_vmem [thread:$0]  %s18, 512, %s20, [#allocation4], 128, 128, 8
    $region9: #{tpu_custom_call.1} parent=1 // pred_fallthru
      _
    // Predicated region
    $region10: #{tpu_custom_call.1} parent=1 // pred_check
      _
    $region11: #{tpu_custom_call.1} parent=1 // pred_check_branch
      %27 = sbr.rel (0) target = $region13
    $region12: #{tpu_custom_call.1} parent=1 // pred_region
      _
    $region13: #{tpu_custom_call.1} parent=1 // pred_fallthru
      _
    // Predicated region
    $region14: #{tpu_custom_call.1} parent=1 // pred_check
      _
    $region15: #{tpu_custom_call.1} parent=1 // pred_check_branch
      %29 = sbr.rel (0) target = $region17
    $region16: #{tpu_custom_call.1} parent=1 // pred_region
      _
    $region17: #{tpu_custom_call.1} parent=1 // pred_fallthru
      _
    // Predicated region
    $region18: #{tpu_custom_call.1} parent=1 // pred_check
      _
    $region19: #{tpu_custom_call.1} parent=1 // pred_check_branch
      %31 = sbr.rel (0) target = $region21
    $region20: #{tpu_custom_call.1} parent=1 // pred_region
      %33 = dma.done [#allocation4], 512
    $region21: #{tpu_custom_call.1} parent=1 // pred_fallthru
      _
    %p34 = scmp.eq.s32.totalorder 0, 0
    // Predicated region
    $region22: #{tpu_custom_call.1} parent=1 // pred_check
      %p35 = pneg %p34
    $region23: #{tpu_custom_call.1} parent=1 // pred_check_branch
      %37 = sbr.rel (%p35) target = $region25
    $region24: #{tpu_custom_call.1} parent=1 // pred_region
      %38 = vst [vmem:[#allocation2] sm:$0xff] 0.0
    $region25: #{tpu_custom_call.1} parent=1 // pred_fallthru
      _
    %v39 = vld [vmem:[#allocation2] sm:$0xff]
    %v40 = vld [vmem:[%s0] sm:$0xff]
    %v41 = vld [vmem:[#allocation3] sm:$0xff]
    %v42 = vld [vmem:[#allocation3 + $0x8] sm:$0xff]
    %v43 = vld [vmem:[#allocation3 + $0x10] sm:$0xff]
    %v44 = vld [vmem:[#allocation3 + $0x18] sm:$0xff]
    %vm45 = vcmask 261120
    %v47 = vsel %vm45, %v40, 0
    %49 = vmatpush.msra.mxu0 0.0
    %50 = vmatpush.msra.mxu0 0.0
    %51 = vmatpush.msra.mxu0 0.0
    %52 = vmatpush.msra.mxu0 0.0
    %53 = vmatpush.msra.mxu0 0.0
    %54 = vmatpush.msra.mxu0 0.0
    %55 = vmatpush.msra.mxu0 0.0
    %56 = vmatpush.msra.mxu0 0.0
    %57 = vmatpush.msra.mxu0 0.0
    %58 = vmatpush.msra.mxu0 0.0
    %59 = vmatpush.msra.mxu0 0.0
    %60 = vmatpush.msra.mxu0 0.0
    %61 = vmatpush.msra.mxu0 %v44
    %62 = vmatpush.msra.mxu0 %v43
    %63 = vmatpush.msra.mxu0 %v42
    %64 = vmatpush.msra.mxu0 %v41
    %65 = vmatmul.f32.gmra.mxu0 %v47
    %v66 = vpop.f32.mrf.mxu0
    %v67 = vadd.f32 0.0, %v66
    %68 = vdwg.mxu0
    %v69 = vadd.f32 %v39, %v67
    %70 = vst [vmem:[#allocation2] sm:$0xff] %v69
    // Predicated region
    $region26: #{tpu_custom_call.1} parent=1 // pred_check
      %p71 = pneg %p34
    $region27: #{tpu_custom_call.1} parent=1 // pred_check_branch
      %73 = sbr.rel (%p71) target = $region29
    $region28: #{tpu_custom_call.1} parent=1 // pred_region
      %v74 = vld [vmem:[#allocation2] sm:$0xff]
      %v75 = vld [vmem:[%s2] sm:$0xff]
      %77 = vset.pattern.permute.xlu0 0
      %78 = vperm.xlu0 %77, %v75
      %v79 = vpop.permute.xlu0 %78
      %v81 = vmul.f32 %v74, %v79
      %v82 = vld [vmem:[%s3] sm:$0x1]
      %v84 = vperm.slane %v82, 0
      %v86 = vmul.f32 %v81, %v84
      %87 = vst [vmem:[#allocation6] sm:$0xff] %v86
    $region29: #{tpu_custom_call.1} parent=1 // pred_fallthru
      _
    // Predicated region
    $region30: #{tpu_custom_call.1} parent=1 // pred_check
      _
    $region31: #{tpu_custom_call.1} parent=1 // pred_check_branch
      %89 = sbr.rel (0) target = $region33
    $region32: #{tpu_custom_call.1} parent=1 // pred_region
      %91 = vsyncadd [#allocation5], 0
      %s93 = sshll.u32 [#allocation6], 4
      %s94 = int_to_ptr.vmem [resolvable:$true] %s93
      %s95 = sshll.u32 %s4, 4
      %s96 = int_to_ptr.hbm [resolvable:$true] %s95
      %98 = dma.vmem_to_hbm [thread:$0]  %s94, 128, %s96, [#allocation5]
    $region33: #{tpu_custom_call.1} parent=1 // pred_fallthru
      _
    // Predicated region
    $region34: #{tpu_custom_call.1} parent=1 // pred_check
      _
    $region35: #{tpu_custom_call.1} parent=1 // pred_check_branch
      %100 = sbr.rel (0) target = $region37
    $region36: #{tpu_custom_call.1} parent=1 // pred_region
      %102 = dma.done [#allocation5], 128
    $region37: #{tpu_custom_call.1} parent=1 // pred_fallthru
      _
    %103 = vsyncpa [#allocation4], 1
    %104 = vsyncpa [#allocation5], 1

</llo_original>
